<compile_context>
chip_gen: v7x
topology: tpu7x:2x2x1
jax: 0.10.0
libtpu: 0.0.40
codegen_flags: <defaults>
</compile_context>

<pallas_src>
import jax
import jax.numpy as jnp
from jax.experimental import pallas as pl
from jax.experimental.pallas import tpu as pltpu


# ------------------------------------------------------------------
# Kernel 1: fused LayerNorm (over channels, per pixel) + 1x1 conv (channel matmul)
# x presented as (P, C) rows of pixels; tiled over P.
# ------------------------------------------------------------------
def _ln_proj_kernel(x_ref, g_ref, b_ref, w_ref, o_ref):
    x = x_ref[...].astype(jnp.float32)                          # (TP, C)
    mean = jnp.mean(x, axis=-1, keepdims=True)
    var = jnp.mean((x - mean) ** 2, axis=-1, keepdims=True)     # biased var (torch LayerNorm)
    xn = (x - mean) * jax.lax.rsqrt(var + 1e-5)
    xn = xn * g_ref[...] + b_ref[...]                           # (1, C) broadcast, f32
    # bf16 MXU operands, f32 accumulation.
    o_ref[...] = jnp.dot(xn.astype(jnp.bfloat16), w_ref[...],
                         preferred_element_type=jnp.float32).astype(o_ref.dtype)


def _pick_row_tile(P):
    """Largest multiple-of-8 pixel tile <= 512 that divides P and leaves >= 2 grid steps."""
    cap = min(512, max(8, P // 2))
    for t in range(cap - cap % 8, 7, -8):
        if P % t == 0:
            return t
    return P  # fall back to a single full block (still full-dim aligned)


def ln_proj(x_flat, gamma, beta, w_bf16):
    P, C = x_flat.shape
    Cout = w_bf16.shape[1]
    tp = _pick_row_tile(P)
    # VMEM budget (double-buffered): 2*(tp*C + tp*Cout)*4B + C*Cout*2B  << 32 MiB scoped
    # default on every generation (v7x physical VMEM is only 64 MiB).
    return pl.pallas_call(
        _ln_proj_kernel,
        out_shape=jax.ShapeDtypeStruct((P, Cout), jnp.float32),
        grid_spec=pltpu.PrefetchScalarGridSpec(
            num_scalar_prefetch=0,
            grid=(P // tp,),
            in_specs=[
                pl.BlockSpec((tp, C), lambda i: (i, 0)),
                pl.BlockSpec((1, C), lambda i: (0, 0)),    # resident
                pl.BlockSpec((1, C), lambda i: (0, 0)),    # resident
                pl.BlockSpec((C, Cout), lambda i: (0, 0)),  # resident
            ],
            out_specs=pl.BlockSpec((tp, Cout), lambda i: (i, 0)),
        ),
        compiler_params=pltpu.CompilerParams(dimension_semantics=("parallel",)),
    )(x_flat, gamma, beta, w_bf16)


# ------------------------------------------------------------------
# Kernel 2: 3x3 conv (padding=1, no bias) as a single im2col matmul (K = 9*C),
# with the Stage-2 running sum fused in (levels >= 1).
#   * halo handled in a zeroed VMEM scratch (no padded tensor in HBM)
#   * patch slab built in a VMEM scratch, one MXU matmul against (9*C, Cout) bf16
# ------------------------------------------------------------------
def _conv_body(mid_f32, w_ref, o_ref, xp_scr, col_scr):
    _, H, W, Cout = o_ref.shape
    C = xp_scr.shape[-1]
    # Zero-padded copy of this tile (in-kernel halo).
    xp_scr[...] = jnp.zeros_like(xp_scr)
    xp_scr[1:H + 1, 1:W + 1, :] = mid_f32
    # im2col: (H*W, 9*C) bf16 slab so the whole 3x3 conv is ONE matmul.
    for dy in range(3):
        for dx in range(3):
            j = dy * 3 + dx
            col_scr[:, j * C:(j + 1) * C] = (
                xp_scr[dy:dy + H, dx:dx + W, :]
                .reshape(H * W, C).astype(jnp.bfloat16))
    out = jnp.dot(col_scr[...], w_ref[...], preferred_element_type=jnp.float32)
    o_ref[0] = out.reshape(H, W, Cout).astype(o_ref.dtype)


def _conv3x3_kernel_noprev(f_ref, w_ref, o_ref, xp_scr, col_scr):
    _conv_body(f_ref[0], w_ref, o_ref, xp_scr, col_scr)


def _conv3x3_kernel_addprev(prev_ref, f_ref, w_ref, mid_ref, o_ref, xp_scr, col_scr):
    mid = prev_ref[0] + f_ref[0]          # fused running-sum (f32)
    mid_ref[0] = mid                      # cumulative map for the next level
    _conv_body(mid, w_ref, o_ref, xp_scr, col_scr)


def conv3x3_fused(feat_nhwc, w_flat_bf16, prev_nhwc=None):
    """3x3 conv of (prev + feat) [or just feat if prev is None].

    Returns `out` (prev is None) or `(mid, out)` where mid = prev + feat.
    w_flat_bf16: (9*C, Cout) == torch Conv2d weight (Cout,Cin,3,3) -> (ky,kx,Cin,Cout) -> flat.
    """
    N, H, W, C = feat_nhwc.shape
    Cout = w_flat_bf16.shape[-1]
    scratch = [pltpu.VMEM((H + 2, W + 2, C), jnp.float32),       # padded tile
               pltpu.VMEM((H * W, 9 * C), jnp.bfloat16)]         # im2col slab
    # TODO(synk): for N==1 at production spatial sizes, additionally tile H (with a
    # manual halo DMA) so v7x's second TensorCore gets work.
    if prev_nhwc is None:
        kernel = _conv3x3_kernel_noprev
        out_shape = jax.ShapeDtypeStruct((N, H, W, Cout), jnp.float32)
        in_specs = [pl.BlockSpec((1, H, W, C), lambda n: (n, 0, 0, 0)),
                    pl.BlockSpec((9 * C, Cout), lambda n: (0, 0))]
        out_specs = pl.BlockSpec((1, H, W, Cout), lambda n: (n, 0, 0, 0))
        args = (feat_nhwc, w_flat_bf16)
    else:
        kernel = _conv3x3_kernel_addprev
        out_shape = (jax.ShapeDtypeStruct((N, H, W, C), jnp.float32),
                     jax.ShapeDtypeStruct((N, H, W, Cout), jnp.float32))
        in_specs = [pl.BlockSpec((1, H, W, C), lambda n: (n, 0, 0, 0)),
                    pl.BlockSpec((1, H, W, C), lambda n: (n, 0, 0, 0)),
                    pl.BlockSpec((9 * C, Cout), lambda n: (0, 0))]
        out_specs = (pl.BlockSpec((1, H, W, C), lambda n: (n, 0, 0, 0)),
                     pl.BlockSpec((1, H, W, Cout), lambda n: (n, 0, 0, 0)))
        args = (prev_nhwc, feat_nhwc, w_flat_bf16)

    return pl.pallas_call(
        kernel,
        out_shape=out_shape,
        grid_spec=pltpu.PrefetchScalarGridSpec(
            num_scalar_prefetch=0,
            grid=(N,),
            in_specs=in_specs,
            out_specs=out_specs,
            scratch_shapes=scratch,
        ),
        compiler_params=pltpu.CompilerParams(dimension_semantics=("parallel",)),
    )(*args)


# ------------------------------------------------------------------
# MLANeck forward (hot paths in the two kernels above)
# ------------------------------------------------------------------
def mla_neck_forward(inputs_nchw, params):
    # Stage 1: per-level token LayerNorm + channel_proj (1x1 conv), fused.
    # One NCHW->NHWC layout pass per level (unavoidable with the PyTorch NCHW
    # interface; a fully-NHWC pipeline would drop it entirely).
    feats = []
    for i, x in enumerate(inputs_nchw):
        N, C, H, W = x.shape
        x_flat = jnp.transpose(x, (0, 2, 3, 1)).reshape(N * H * W, C)
        f = ln_proj(x_flat, params["ln_gamma"][i], params["ln_beta"][i],
                    params["w_proj"][i])
        feats.append(f.reshape(N, H, W, -1))

    # Stage 2 + 3 fused: the running (cumulative) sum is computed inside the
    # 3x3-conv kernel, which also emits the cumulative map for the next level.
    feats = feats[::-1]
    outs = [conv3x3_fused(feats[0], params["w_feat"][0])]
    mid = feats[0]
    for j in range(1, len(feats)):
        mid, yj = conv3x3_fused(feats[j], params["w_feat"][j], prev_nhwc=mid)
        outs.append(yj)
    return tuple(jnp.transpose(y, (0, 3, 1, 2)) for y in outs)   # back to NCHW


# ------------------------------------------------------------------
# Pure-JAX reference for validation (same bf16-operand / f32-accumulate policy)
# ------------------------------------------------------------------
def mla_neck_reference(inputs_nchw, params):
    feats = []
    for i, x in enumerate(inputs_nchw):
        xt = jnp.transpose(x, (0, 2, 3, 1)).astype(jnp.float32)
        mean = jnp.mean(xt, axis=-1, keepdims=True)
        var = jnp.mean((xt - mean) ** 2, axis=-1, keepdims=True)
        xn = (xt - mean) / jnp.sqrt(var + 1e-5)
        xn = xn * params["ln_gamma"][i][0] + params["ln_beta"][i][0]
        f = jnp.einsum("nhwc,cd->nhwd", xn.astype(jnp.bfloat16),
                       params["w_proj"][i], preferred_element_type=jnp.float32)
        feats.append(f)
    feats = feats[::-1]
    mids = []
    for f in feats:
        mids.append(f if not mids else mids[-1] + f)
    outs = []
    for j, mid in enumerate(mids):
        wf = params["w_feat"][j]                       # (9*C, Cout) bf16
        C, Cout = mid.shape[-1], wf.shape[-1]
        w_hwio = wf.reshape(3, 3, C, Cout)
        y = jax.lax.conv_general_dilated(
            mid.astype(jnp.bfloat16), w_hwio, window_strides=(1, 1),
            padding="SAME", dimension_numbers=("NHWC", "HWIO", "NHWC"),
            preferred_element_type=jnp.float32)
        outs.append(jnp.transpose(y, (0, 3, 1, 2)))
    return tuple(outs)


# ------------------------------------------------------------------
# Deterministic parameter init (no checkpoint loading)
# ------------------------------------------------------------------
def init_params(key, in_channels_list, out_channels):
    params = {"ln_gamma": [], "ln_beta": [], "w_proj": [], "w_feat": []}
    for c in in_channels_list:
        key, k1, k2, k3 = jax.random.split(key, 4)
        params["ln_gamma"].append(1.0 + 0.1 * jax.random.normal(k1, (1, c), jnp.float32))
        params["ln_beta"].append(0.1 * jax.random.normal(k2, (1, c), jnp.float32))
        w = jax.random.normal(k3, (c, out_channels), jnp.float32) / jnp.sqrt(c)
        params["w_proj"].append(w.astype(jnp.bfloat16))
    for _ in in_channels_list:
        key, k1 = jax.random.split(key)
        wf = (jax.random.normal(k1, (9, out_channels, out_channels), jnp.float32)
              / jnp.sqrt(9.0 * out_channels))
        params["w_feat"].append(
            wf.reshape(9 * out_channels, out_channels).astype(jnp.bfloat16))
    return params


if __name__ == "__main__":
    key = jax.random.PRNGKey(0)
    # Small but lane-dense shapes: Cout = 128 keeps every output store unmasked
    # and the MXU N-dimension fully utilized.
    in_channels_list = [128, 128, 128, 128]
    out_channels = 128
    N, H, W = 2, 16, 16

    key, kparams = jax.random.split(key)
    inputs = []
    for i in range(len(in_channels_list)):
        key, k = jax.random.split(key)
        inputs.append(jax.random.normal(k, (N, in_channels_list[i], H, W), jnp.float32))

    params = init_params(kparams, in_channels_list, out_channels)

    outs = mla_neck_forward(inputs, params)
    outs = jax.block_until_ready(outs)

    refs = mla_neck_reference(inputs, params)
    # bf16 MXU operands + f32 accumulation: kernel and reference differ only by
    # reduction order, so a 1e-2 tolerance is comfortably loose.
    for o, r in zip(outs, refs):
        assert o.shape == (N, out_channels, H, W), o.shape
        assert jnp.allclose(o, r, atol=1e-2, rtol=1e-2), float(jnp.max(jnp.abs(o - r)))

    print("KERNEL_OK")
</pallas_src>

<mosaic_0001>
module attributes {stable_mosaic.version = 11 : i64} {
  func.func @_ln_proj_kernel(%arg0: i32, %arg1: memref<256x128xf32, #tpu.memory_space<vmem>>, %arg2: memref<1x128xf32, #tpu.memory_space<vmem>>, %arg3: memref<1x128xf32, #tpu.memory_space<vmem>>, %arg4: memref<128x128xbf16, #tpu.memory_space<vmem>>, %arg5: memref<256x128xf32, #tpu.memory_space<vmem>>) attributes {dimension_semantics = [#tpu.dimension_semantics<parallel>], iteration_bounds = array<i64: 2>, scalar_prefetch = 0 : i64, scratch_operands = 0 : i64, tpu.core_type = #tpu.core_type<tc>, window_params = [{transform_indices = @transform_0, window_bounds = array<i64: 256, 128>}, {pipeline_mode = #tpu.pipeline_mode<synchronous>, transform_indices = @transform_1, window_bounds = array<i64: 1, 128>}, {pipeline_mode = #tpu.pipeline_mode<synchronous>, transform_indices = @transform_2, window_bounds = array<i64: 1, 128>}, {pipeline_mode = #tpu.pipeline_mode<synchronous>, transform_indices = @transform_3, window_bounds = array<i64: 128, 128>}, {transform_indices = @transform_4, window_bounds = array<i64: 256, 128>}]} {
    %c0 = arith.constant 0 : index
    %c0_0 = arith.constant 0 : index
    %0 = vector.load %arg1[%c0, %c0_0] : memref<256x128xf32, #tpu.memory_space<vmem>>, vector<256x128xf32>
    %cst = arith.constant dense<0.000000e+00> : vector<256xf32>
    %1 = vector.multi_reduction <add>, %0, %cst [1] : vector<256x128xf32> to vector<256xf32>
    %2 = vector.shape_cast %1 : vector<256xf32> to vector<256x1xf32>
    %cst_1 = arith.constant 1.280000e+02 : f32
    %3 = vector.broadcast %cst_1 : f32 to vector<256x1xf32>
    %4 = arith.divf %2, %3 : vector<256x1xf32>
    %5 = vector.broadcast %4 : vector<256x1xf32> to vector<256x128xf32>
    %6 = arith.subf %0, %5 : vector<256x128xf32>
    %7 = arith.mulf %6, %6 : vector<256x128xf32>
    %cst_2 = arith.constant dense<0.000000e+00> : vector<256xf32>
    %8 = vector.multi_reduction <add>, %7, %cst_2 [1] : vector<256x128xf32> to vector<256xf32>
    %9 = vector.shape_cast %8 : vector<256xf32> to vector<256x1xf32>
    %cst_3 = arith.constant 1.280000e+02 : f32
    %10 = vector.broadcast %cst_3 : f32 to vector<256x1xf32>
    %11 = arith.divf %9, %10 : vector<256x1xf32>
    %12 = vector.broadcast %4 : vector<256x1xf32> to vector<256x128xf32>
    %13 = arith.subf %0, %12 : vector<256x128xf32>
    %cst_4 = arith.constant 9.99999974E-6 : f32
    %14 = vector.broadcast %cst_4 : f32 to vector<256x1xf32>
    %15 = arith.addf %11, %14 : vector<256x1xf32>
    %16 = math.rsqrt %15 : vector<256x1xf32>
    %17 = vector.broadcast %16 : vector<256x1xf32> to vector<256x128xf32>
    %18 = arith.mulf %13, %17 : vector<256x128xf32>
    %c0_5 = arith.constant 0 : index
    %c0_6 = arith.constant 0 : index
    %19 = vector.load %arg2[%c0_5, %c0_6] : memref<1x128xf32, #tpu.memory_space<vmem>>, vector<1x128xf32>
    %20 = vector.broadcast %19 : vector<1x128xf32> to vector<256x128xf32>
    %21 = arith.mulf %18, %20 : vector<256x128xf32>
    %c0_7 = arith.constant 0 : index
    %c0_8 = arith.constant 0 : index
    %22 = vector.load %arg3[%c0_7, %c0_8] : memref<1x128xf32, #tpu.memory_space<vmem>>, vector<1x128xf32>
    %23 = vector.broadcast %22 : vector<1x128xf32> to vector<256x128xf32>
    %24 = arith.addf %21, %23 : vector<256x128xf32>
    %25 = arith.truncf %24 : vector<256x128xf32> to vector<256x128xbf16>
    %c0_9 = arith.constant 0 : index
    %c0_10 = arith.constant 0 : index
    %26 = vector.load %arg4[%c0_9, %c0_10] : memref<128x128xbf16, #tpu.memory_space<vmem>>, vector<128x128xbf16>
    %cst_11 = arith.constant dense<0.000000e+00> : vector<256x128xf32>
    %27 = tpu.matmul %25, %26, %cst_11 {dimension_numbers = #tpu.dot_dimension_numbers<[1], [0], [0], [1], [0, 0, 1, 1], [], []>} : vector<256x128xbf16>, vector<128x128xbf16>, vector<256x128xf32> -> vector<256x128xf32>
    %c0_12 = arith.constant 0 : index
    %c0_13 = arith.constant 0 : index
    %28 = vector.load %arg5[%c0_12, %c0_13] : memref<256x128xf32, #tpu.memory_space<vmem>>, vector<256x128xf32>
    tpu.vector_store %arg5[%c0_12, %c0_13], %27 {strides = array<i32>} : memref<256x128xf32, #tpu.memory_space<vmem>>, vector<256x128xf32>,
    return
  }
  func.func @transform_0(%arg0: i32) -> (i32, i32) {
    %c0_i32 = arith.constant 0 : i32
    %c0_i32_0 = arith.constant 0 : i32
    return %arg0, %c0_i32 : i32, i32
  }
  func.func @transform_1(%arg0: i32) -> (i32, i32) {
    %c0_i32 = arith.constant 0 : i32
    %c0_i32_0 = arith.constant 0 : i32
    %c0_i32_1 = arith.constant 0 : i32
    return %c0_i32, %c0_i32_0 : i32, i32
  }
  func.func @transform_2(%arg0: i32) -> (i32, i32) {
    %c0_i32 = arith.constant 0 : i32
    %c0_i32_0 = arith.constant 0 : i32
    %c0_i32_1 = arith.constant 0 : i32
    return %c0_i32, %c0_i32_0 : i32, i32
  }
  func.func @transform_3(%arg0: i32) -> (i32, i32) {
    %c0_i32 = arith.constant 0 : i32
    %c0_i32_0 = arith.constant 0 : i32
    %c0_i32_1 = arith.constant 0 : i32
    return %c0_i32, %c0_i32_0 : i32, i32
  }
  func.func @transform_4(%arg0: i32) -> (i32, i32) {
    %c0_i32 = arith.constant 0 : i32
    %c0_i32_0 = arith.constant 0 : i32
    return %arg0, %c0_i32 : i32, i32
  }
}

</mosaic_0001>

<llo_original>
// kernel: tpu_custom_call.1
$region0: #{tpu_custom_call.1}
  #allocation0 [shape = 'u32[]', space=smem, size = 0x4, offset = 0x4, fixed_abs, tag = 'smem constant byte address 0x4 - core index']
  #allocation1 [shape = 'u32[144,128]{1,0:T(1,128)}', space=vmem, size = 0x12000, scoped, tag = 'internal scratch']
  %s0 = inlined_call_operand.hbm [shape: f32[512,128], index: 0, kind: input, shape index: {}]
  %s1 = inlined_call_operand.vmem [shape: f32[1,128], index: 1, kind: input, shape index: {}]
  %s2 = inlined_call_operand.vmem [shape: f32[1,128], index: 2, kind: input, shape index: {}]
  %s3 = inlined_call_operand.hbm [shape: bf16[128,128], index: 3, kind: input, shape index: {}]
  %s4 = inlined_call_operand.hbm [shape: f32[512,128], index: 4, kind: output, shape index: {}]
  %s5 = sld [smem:[#allocation0]]
  $region57: #{tpu_custom_call.1} parent=0
    _
  %s7 = ssub.s32 1, %s5
  %s8 = scalar_select 0, %s7, %s5
  $region1: #{tpu_custom_call.1} parent=0
    #allocation2 [shape = 'u8[262144]{0}', space=vmem, size = 0x40000, scoped, tag = 'input window, operand 0']
    #allocation3 [shape = 's32[2]{0}', space=sflag, size = 0x8, scoped, tag = 'scoped memory for tpu_custom_call.1']
    #allocation4 [shape = 's32[2]{0}', space=sflag, size = 0x8, scoped, tag = 'scoped memory for tpu_custom_call.1']
    #allocation5 [shape = 'u8[32768]{0}', space=vmem, size = 0x8000, scoped, tag = 'input window, operand 3, single buffered']
    #allocation6 [shape = 's32[1]{0}', space=sflag, size = 0x4, scoped, tag = 'scoped memory for tpu_custom_call.1']
    #allocation7 [shape = 'u8[262144]{0}', space=vmem, size = 0x40000, scoped, tag = 'output window, operand 0']
    %9 = vsyncpa [#allocation3], 0
    %s10 = scalar_lea.sflag [#allocation3], 1
    %11 = vsyncpa %s10, 0
    %12 = vsyncpa [#allocation6], 0
    %13 = vsyncpa [#allocation4], 0
    %s14 = scalar_lea.sflag [#allocation4], 1
    %15 = vsyncpa %s14, 0
    loop: start=0, step=1, limit=4
    $region2: #{tpu_custom_call.1} parent=1 // loop_pre_header
      _
    $region3: #{tpu_custom_call.1} parent=1 // loop_header
      %s17 = sphi 0, %s21
      %p18 = scmp.ge.s32.totalorder %s17, 4
      %s27 = sphi 0, %s29
      %s30 = sphi 0, %s27
      %s31 = sphi 0, %s30
      %s47 = sphi 0, %s31
      %s51 = sphi 0, %s51
      %s53 = sphi 0, %s51
      %s54 = sphi 0, %s53
      %s68 = sphi 0, %s54
      %s72 = sphi 0, %s72
      %s74 = sphi 0, %s72
      %s75 = sphi 0, %s74
      %s89 = sphi 0, %s75
      %s93 = sphi 0, %s93
      %s95 = sphi 0, %s93
      %s96 = sphi 0, %s95
      %s110 = sphi 0, %s96
      %s116 = sphi 0, %s118
      %s119 = sphi 0, %s116
      %s120 = sphi 0, %s119
      %s136 = sphi 0, %s120
    $region4: #{tpu_custom_call.1} parent=1 // loop_header_branch
      %20 = sbr.rel (%p18) target = $region8
    $region5: #{tpu_custom_call.1} parent=1 // loop_body
      %s22 = ssub.s32 %s17, 1
      %s23 = ssub.s32 %s17, 2
      %s24 = sadd.s32 %s17, 1
      %s25 = ssub.s32 %s17, %s24
      %p26 = scmp.eq.s32.totalorder %s25, 0
      %s28 = sadd.s32 %s27, 1
      %s29 = scalar_select %p26, %s27, %s28
      %p32 = pneg %p26
      %p33 = scmp.eq.s32.totalorder %s17, 1
      %p34 = por %p32, %p33
      %p35 = scmp.ne.s32.totalorder %s27, %s30
      %p36 = scmp.eq.s32.totalorder %s17, 0
      %p37 = por %p35, %p36
      %p38 = scmp.ne.s32.totalorder %s27, %s30
      %p39 = scmp.eq.s32.totalorder %s22, 1
      %p40 = por %p38, %p39
      %p41 = scmp.ne.s32.totalorder %s30, %s31
      %p42 = scmp.eq.s32.totalorder %s22, 0
      %p43 = por %p41, %p42
      %p44 = scmp.ne.s32.totalorder %s30, %s31
      %p45 = scmp.eq.s32.totalorder %s23, 1
      %p46 = por %p44, %p45
      %p48 = scmp.ne.s32.totalorder %s31, %s47
      %p49 = scmp.eq.s32.totalorder %s23, 0
      %p50 = por %p48, %p49
      %s52 = sadd.s32 %s51, 1
      %p55 = scmp.eq.s32.totalorder %s17, 1
      %p56 = scmp.ne.s32.totalorder %s51, %s53
      %p57 = scmp.eq.s32.totalorder %s17, 0
      %p58 = por %p56, %p57
      %p59 = scmp.ne.s32.totalorder %s51, %s53
      %p60 = scmp.eq.s32.totalorder %s22, 1
      %p61 = por %p59, %p60
      %p62 = scmp.ne.s32.totalorder %s53, %s54
      %p63 = scmp.eq.s32.totalorder %s22, 0
      %p64 = por %p62, %p63
      %p65 = scmp.ne.s32.totalorder %s53, %s54
      %p66 = scmp.eq.s32.totalorder %s23, 1
      %p67 = por %p65, %p66
      %p69 = scmp.ne.s32.totalorder %s54, %s68
      %p70 = scmp.eq.s32.totalorder %s23, 0
      %p71 = por %p69, %p70
      %s73 = sadd.s32 %s72, 1
      %p76 = scmp.eq.s32.totalorder %s17, 1
      %p77 = scmp.ne.s32.totalorder %s72, %s74
      %p78 = scmp.eq.s32.totalorder %s17, 0
      %p79 = por %p77, %p78
      %p80 = scmp.ne.s32.totalorder %s72, %s74
      %p81 = scmp.eq.s32.totalorder %s22, 1
      %p82 = por %p80, %p81
      %p83 = scmp.ne.s32.totalorder %s74, %s75
      %p84 = scmp.eq.s32.totalorder %s22, 0
      %p85 = por %p83, %p84
      %p86 = scmp.ne.s32.totalorder %s74, %s75
      %p87 = scmp.eq.s32.totalorder %s23, 1
      %p88 = por %p86, %p87
      %p90 = scmp.ne.s32.totalorder %s75, %s89
      %p91 = scmp.eq.s32.totalorder %s23, 0
      %p92 = por %p90, %p91
      %s94 = sadd.s32 %s93, 1
      %p97 = scmp.eq.s32.totalorder %s17, 1
      %p98 = scmp.ne.s32.totalorder %s93, %s95
      %p99 = scmp.eq.s32.totalorder %s17, 0
      %p100 = por %p98, %p99
      %p101 = scmp.ne.s32.totalorder %s93, %s95
      %p102 = scmp.eq.s32.totalorder %s22, 1
      %p103 = por %p101, %p102
      %p104 = scmp.ne.s32.totalorder %s95, %s96
      %p105 = scmp.eq.s32.totalorder %s22, 0
      %p106 = por %p104, %p105
      %p107 = scmp.ne.s32.totalorder %s95, %s96
      %p108 = scmp.eq.s32.totalorder %s23, 1
      %p109 = por %p107, %p108
      %p111 = scmp.ne.s32.totalorder %s96, %s110
      %p112 = scmp.eq.s32.totalorder %s23, 0
      %p113 = por %p111, %p112
      %s114 = ssub.s32 %s17, %s24
      %p115 = scmp.eq.s32.totalorder %s114, 0
      %s117 = sadd.s32 %s116, 1
      %s118 = scalar_select %p115, %s116, %s117
      %p121 = pneg %p115
      %p122 = scmp.eq.s32.totalorder %s17, 1
      %p123 = por %p121, %p122
      %p124 = scmp.ne.s32.totalorder %s116, %s119
      %p125 = scmp.eq.s32.totalorder %s17, 0
      %p126 = por %p124, %p125
      %p127 = scmp.ne.s32.totalorder %s116, %s119
      %p128 = scmp.eq.s32.totalorder %s22, 1
      %p129 = por %p127, %p128
      %p130 = scmp.ne.s32.totalorder %s119, %s120
      %p131 = scmp.eq.s32.totalorder %s22, 0
      %p132 = por %p130, %p131
      %p133 = scmp.ne.s32.totalorder %s119, %s120
      %p134 = scmp.eq.s32.totalorder %s23, 1
      %p135 = por %p133, %p134
      %p137 = scmp.ne.s32.totalorder %s120, %s136
      %p138 = scmp.eq.s32.totalorder %s23, 0
      %p139 = por %p137, %p138
      %p140 = scmp.le.s32.totalorder 1, %s17
      %p141 = scmp.lt.s32.totalorder %s17, 3
      %p142 = pnand %p140, %p141
      %p143 = pneg %p142
      // Predicated region
      $region9: #{tpu_custom_call.1} parent=5 // pred_check
        _
      $region10: #{tpu_custom_call.1} parent=5 // pred_check_branch
        %145 = sbr.rel (%p142) target = $region12
      $region11: #{tpu_custom_call.1} parent=5 // pred_region
        %s146 = ssub.s32 %s17, 1
        // Predicated region
        $region13: #{tpu_custom_call.1} parent=11 // pred_check
          %p147 = pneg %p64
        $region14: #{tpu_custom_call.1} parent=11 // pred_check_branch
          %149 = sbr.rel (%p147) target = $region16
        $region15: #{tpu_custom_call.1} parent=11 // pred_region
          _
        $region16: #{tpu_custom_call.1} parent=11 // pred_fallthru
          _
        // Predicated region
        $region17: #{tpu_custom_call.1} parent=11 // pred_check
          %p150 = pneg %p85
        $region18: #{tpu_custom_call.1} parent=11 // pred_check_branch
          %152 = sbr.rel (%p150) target = $region20
        $region19: #{tpu_custom_call.1} parent=11 // pred_region
          _
        $region20: #{tpu_custom_call.1} parent=11 // pred_fallthru
          _
        // Predicated region
        $region21: #{tpu_custom_call.1} parent=11 // pred_check
          %p153 = pneg %p106
        $region22: #{tpu_custom_call.1} parent=11 // pred_check_branch
          %155 = sbr.rel (%p153) target = $region24
        $region23: #{tpu_custom_call.1} parent=11 // pred_region
          %s157 = ssub.s32 1024, 1024
          %158 = vsyncadd [#allocation6], %s157
          %s159 = sshll.u32 [#allocation5], 4
          %s160 = int_to_ptr.vmem [resolvable:$true] %s159
          %165 = dma.hbm_to_vmem [thread:$0]  %s3, 1024, %s160, [#allocation6], 64, 64, 4
        $region24: #{tpu_custom_call.1} parent=11 // pred_fallthru
          _
      $region12: #{tpu_custom_call.1} parent=5 // pred_fallthru
        _
      %p166 = scmp.lt.s32.totalorder %s17, 2
      // Predicated region
      $region25: #{tpu_custom_call.1} parent=5 // pred_check
        %p167 = pneg %p166
      $region26: #{tpu_custom_call.1} parent=5 // pred_check_branch
        %169 = sbr.rel (%p167) target = $region28
      $region27: #{tpu_custom_call.1} parent=5 // pred_region
        // Predicated region
        $region29: #{tpu_custom_call.1} parent=27 // pred_check
          %p170 = pneg %p37
        $region30: #{tpu_custom_call.1} parent=27 // pred_check_branch
          %172 = sbr.rel (%p170) target = $region32
        $region31: #{tpu_custom_call.1} parent=27 // pred_region
          %s173 = sand.u32 %s27, 1
          %s174 = scalar_lea.sflag [#allocation3], %s173
          %s175 = sand.u32 %s27, 1
          %s176 = smul.addr %s175, 256
          %s177 = scalar_lea.vmem [#allocation2], %s176
          %s178 = smul.u32 32, %s17
          %s180 = ssub.s32 4096, 4096
          %181 = vsyncadd %s174, %s180
          %s182 = smul.addr %s178, 128
          %s183 = scalar_lea.hbm %s0, %s182
          %s184 = sshll.u32 %s177, 4
          %s185 = int_to_ptr.vmem [resolvable:$true] %s184
          %190 = dma.hbm_to_vmem [thread:$0]  %s183, 4096, %s185, %s174, 128, 128, 8
        $region32: #{tpu_custom_call.1} parent=27 // pred_fallthru
          _
      $region28: #{tpu_custom_call.1} parent=5 // pred_fallthru
        _
      %p191 = scmp.le.s32.totalorder 1, %s17
      %p192 = scmp.lt.s32.totalorder %s17, 3
      %p193 = pnand %p191, %p192
      %p194 = pneg %p193
      // Predicated region
      $region33: #{tpu_custom_call.1} parent=5 // pred_check
        _
      $region34: #{tpu_custom_call.1} parent=5 // pred_check_branch
        %196 = sbr.rel (%p193) target = $region36
      $region35: #{tpu_custom_call.1} parent=5 // pred_region
        %s197 = ssub.s32 %s17, 1
        %s198 = sand.u32 %s30, 1
        %s199 = scalar_lea.sflag [#allocation3], %s198
        %s200 = sand.u32 %s30, 1
        %s201 = smul.addr %s200, 256
        %s202 = scalar_lea.vmem [#allocation2], %s201
        // Predicated region
        $region37: #{tpu_custom_call.1} parent=35 // pred_check
          %p203 = pneg %p43
        $region38: #{tpu_custom_call.1} parent=35 // pred_check_branch
          %205 = sbr.rel (%p203) target = $region40
        $region39: #{tpu_custom_call.1} parent=35 // pred_region
          %206 = dma.done %s199, 4096
        $region40: #{tpu_custom_call.1} parent=35 // pred_fallthru
          _
        // Predicated region
        $region41: #{tpu_custom_call.1} parent=35 // pred_check
          %p207 = pneg %p106
        $region42: #{tpu_custom_call.1} parent=35 // pred_check_branch
          %209 = sbr.rel (%p207) target = $region44
        $region43: #{tpu_custom_call.1} parent=35 // pred_region
          %210 = dma.done [#allocation6], 1024
        $region44: #{tpu_custom_call.1} parent=35 // pred_fallthru
          _
        %s211 = sand.u32 %s30, 1
        %s212 = scalar_lea.sflag [#allocation3], %s211
        %s213 = sand.u32 %s30, 1
        %s214 = smul.addr %s213, 256
        %s215 = scalar_lea.vmem [#allocation2], %s214
        %p216 = pneg %p43
        %p217 = pneg %p40
        %p218 = pneg %p64
        %p219 = pneg %p61
        %p220 = pneg %p85
        %p221 = pneg %p82
        %p222 = pneg %p106
        %p223 = pneg %p103
        %p224 = pneg %p132
        %p225 = pneg %p129
        %s226 = sand.u32 %s119, 1
        %s227 = scalar_lea.sflag [#allocation4], %s226
        %s228 = sand.u32 %s119, 1
        %s229 = smul.addr %s228, 256
        %s230 = scalar_lea.vmem [#allocation7], %s229
        %s231 = smul.u32 32, %s22
        %s232 = smul.u32 32, %s22
        %v234 = vld [vmem:[%s202] sm:$0xff]
        %v235 = vld [vmem:[%s202 + $0x8] sm:$0xff]
        %v236 = vld [vmem:[%s202 + $0x10] sm:$0xff]
        %v237 = vld [vmem:[%s202 + $0x18] sm:$0xff]
        %v238 = vld [vmem:[%s202 + $0x20] sm:$0xff]
        %v239 = vld [vmem:[%s202 + $0x28] sm:$0xff]
        %v240 = vld [vmem:[%s202 + $0x30] sm:$0xff]
        %v241 = vld [vmem:[%s202 + $0x38] sm:$0xff]
        %v242 = vld [vmem:[%s202 + $0x40] sm:$0xff]
        %v243 = vld [vmem:[%s202 + $0x48] sm:$0xff]
        %v244 = vld [vmem:[%s202 + $0x50] sm:$0xff]
        %v245 = vld [vmem:[%s202 + $0x58] sm:$0xff]
        %v246 = vld [vmem:[%s202 + $0x60] sm:$0xff]
        %v247 = vld [vmem:[%s202 + $0x68] sm:$0xff]
        %v248 = vld [vmem:[%s202 + $0x70] sm:$0xff]
        %v249 = vld [vmem:[%s202 + $0x78] sm:$0xff]
        %v250 = vld [vmem:[%s202 + $0x80] sm:$0xff]
        %v251 = vld [vmem:[%s202 + $0x88] sm:$0xff]
        %v252 = vld [vmem:[%s202 + $0x90] sm:$0xff]
        %v253 = vld [vmem:[%s202 + $0x98] sm:$0xff]
        %v254 = vld [vmem:[%s202 + $0xa0] sm:$0xff]
        %v255 = vld [vmem:[%s202 + $0xa8] sm:$0xff]
        %v256 = vld [vmem:[%s202 + $0xb0] sm:$0xff]
        %v257 = vld [vmem:[%s202 + $0xb8] sm:$0xff]
        %v258 = vld [vmem:[%s202 + $0xc0] sm:$0xff]
        %v259 = vld [vmem:[%s202 + $0xc8] sm:$0xff]
        %v260 = vld [vmem:[%s202 + $0xd0] sm:$0xff]
        %v261 = vld [vmem:[%s202 + $0xd8] sm:$0xff]
        %v262 = vld [vmem:[%s202 + $0xe0] sm:$0xff]
        %v263 = vld [vmem:[%s202 + $0xe8] sm:$0xff]
        %v264 = vld [vmem:[%s202 + $0xf0] sm:$0xff]
        %v265 = vld [vmem:[%s202 + $0xf8] sm:$0xff]
        %266 = vadd.xlane.f32.xlu0 %v234
        %v267 = vpop.xlane.xlu0 %266
        %268 = vadd.xlane.f32.xlu0 %v235
        %v269 = vpop.xlane.xlu0 %268
        %270 = vadd.xlane.f32.xlu0 %v236
        %v271 = vpop.xlane.xlu0 %270
        %272 = vadd.xlane.f32.xlu0 %v237
        %v273 = vpop.xlane.xlu0 %272
        %274 = vadd.xlane.f32.xlu0 %v238
        %v275 = vpop.xlane.xlu0 %274
        %276 = vadd.xlane.f32.xlu0 %v239
        %v277 = vpop.xlane.xlu0 %276
        %278 = vadd.xlane.f32.xlu0 %v240
        %v279 = vpop.xlane.xlu0 %278
        %280 = vadd.xlane.f32.xlu0 %v241
        %v281 = vpop.xlane.xlu0 %280
        %282 = vadd.xlane.f32.xlu0 %v242
        %v283 = vpop.xlane.xlu0 %282
        %284 = vadd.xlane.f32.xlu0 %v243
        %v285 = vpop.xlane.xlu0 %284
        %286 = vadd.xlane.f32.xlu0 %v244
        %v287 = vpop.xlane.xlu0 %286
        %288 = vadd.xlane.f32.xlu0 %v245
        %v289 = vpop.xlane.xlu0 %288
        %290 = vadd.xlane.f32.xlu0 %v246
        %v291 = vpop.xlane.xlu0 %290
        %292 = vadd.xlane.f32.xlu0 %v247
        %v293 = vpop.xlane.xlu0 %292
        %294 = vadd.xlane.f32.xlu0 %v248
        %v295 = vpop.xlane.xlu0 %294
        %296 = vadd.xlane.f32.xlu0 %v249
        %v297 = vpop.xlane.xlu0 %296
        %298 = vadd.xlane.f32.xlu0 %v250
        %v299 = vpop.xlane.xlu0 %298
        %300 = vadd.xlane.f32.xlu0 %v251
        %v301 = vpop.xlane.xlu0 %300
        %302 = vadd.xlane.f32.xlu0 %v252
        %v303 = vpop.xlane.xlu0 %302
        %304 = vadd.xlane.f32.xlu0 %v253
        %v305 = vpop.xlane.xlu0 %304
        %306 = vadd.xlane.f32.xlu0 %v254
        %v307 = vpop.xlane.xlu0 %306
        %308 = vadd.xlane.f32.xlu0 %v255
        %v309 = vpop.xlane.xlu0 %308
        %310 = vadd.xlane.f32.xlu0 %v256
        %v311 = vpop.xlane.xlu0 %310
        %312 = vadd.xlane.f32.xlu0 %v257
        %v313 = vpop.xlane.xlu0 %312
        %314 = vadd.xlane.f32.xlu0 %v258
        %v315 = vpop.xlane.xlu0 %314
        %316 = vadd.xlane.f32.xlu0 %v259
        %v317 = vpop.xlane.xlu0 %316
        %318 = vadd.xlane.f32.xlu0 %v260
        %v319 = vpop.xlane.xlu0 %318
        %320 = vadd.xlane.f32.xlu0 %v261
        %v321 = vpop.xlane.xlu0 %320
        %322 = vadd.xlane.f32.xlu0 %v262
        %v323 = vpop.xlane.xlu0 %322
        %324 = vadd.xlane.f32.xlu0 %v263
        %v325 = vpop.xlane.xlu0 %324
        %326 = vadd.xlane.f32.xlu0 %v264
        %v327 = vpop.xlane.xlu0 %326
        %328 = vadd.xlane.f32.xlu0 %v265
        %v329 = vpop.xlane.xlu0 %328
        %v330 = vrcp.pop 128.0
        %v331 = vmul.f32 %v267, %v330
        %v332 = vmul.f32 %v269, %v330
        %v333 = vmul.f32 %v271, %v330
        %v334 = vmul.f32 %v273, %v330
        %v335 = vmul.f32 %v275, %v330
        %v336 = vmul.f32 %v277, %v330
        %v337 = vmul.f32 %v279, %v330
        %v338 = vmul.f32 %v281, %v330
        %v339 = vmul.f32 %v283, %v330
        %v340 = vmul.f32 %v285, %v330
        %v341 = vmul.f32 %v287, %v330
        %v342 = vmul.f32 %v289, %v330
        %v343 = vmul.f32 %v291, %v330
        %v344 = vmul.f32 %v293, %v330
        %v345 = vmul.f32 %v295, %v330
        %v346 = vmul.f32 %v297, %v330
        %v347 = vmul.f32 %v299, %v330
        %v348 = vmul.f32 %v301, %v330
        %v349 = vmul.f32 %v303, %v330
        %v350 = vmul.f32 %v305, %v330
        %v351 = vmul.f32 %v307, %v330
        %v352 = vmul.f32 %v309, %v330
        %v353 = vmul.f32 %v311, %v330
        %v354 = vmul.f32 %v313, %v330
        %v355 = vmul.f32 %v315, %v330
        %v356 = vmul.f32 %v317, %v330
        %v357 = vmul.f32 %v319, %v330
        %v358 = vmul.f32 %v321, %v330
        %v359 = vmul.f32 %v323, %v330
        %v360 = vmul.f32 %v325, %v330
        %v361 = vmul.f32 %v327, %v330
        %v362 = vmul.f32 %v329, %v330
        %v363 = vsub.f32 %v234, %v331
        %v364 = vsub.f32 %v235, %v332
        %v365 = vsub.f32 %v236, %v333
        %v366 = vsub.f32 %v237, %v334
        %v367 = vsub.f32 %v238, %v335
        %v368 = vsub.f32 %v239, %v336
        %v369 = vsub.f32 %v240, %v337
        %v370 = vsub.f32 %v241, %v338
        %v371 = vsub.f32 %v242, %v339
        %v372 = vsub.f32 %v243, %v340
        %v373 = vsub.f32 %v244, %v341
        %v374 = vsub.f32 %v245, %v342
        %v375 = vsub.f32 %v246, %v343
        %v376 = vsub.f32 %v247, %v344
        %v377 = vsub.f32 %v248, %v345
        %v378 = vsub.f32 %v249, %v346
        %v379 = vsub.f32 %v250, %v347
        %v380 = vsub.f32 %v251, %v348
        %v381 = vsub.f32 %v252, %v349
        %v382 = vsub.f32 %v253, %v350
        %v383 = vsub.f32 %v254, %v351
        %v384 = vsub.f32 %v255, %v352
        %v385 = vsub.f32 %v256, %v353
        %v386 = vsub.f32 %v257, %v354
        %v387 = vsub.f32 %v258, %v355
        %v388 = vsub.f32 %v259, %v356
        %v389 = vsub.f32 %v260, %v357
        %v390 = vsub.f32 %v261, %v358
        %v391 = vsub.f32 %v262, %v359
        %v392 = vsub.f32 %v263, %v360
        %v393 = vsub.f32 %v264, %v361
        %v394 = vsub.f32 %v265, %v362
        %v395 = vmul.f32 %v363, %v363
        %v396 = vmul.f32 %v364, %v364
        %v397 = vmul.f32 %v365, %v365
        %v398 = vmul.f32 %v366, %v366
        %v399 = vmul.f32 %v367, %v367
        %v400 = vmul.f32 %v368, %v368
        %v401 = vmul.f32 %v369, %v369
        %v402 = vmul.f32 %v370, %v370
        %v403 = vmul.f32 %v371, %v371
        %v404 = vmul.f32 %v372, %v372
        %v405 = vmul.f32 %v373, %v373
        %v406 = vmul.f32 %v374, %v374
        %v407 = vmul.f32 %v375, %v375
        %v408 = vmul.f32 %v376, %v376
        %v409 = vmul.f32 %v377, %v377
        %v410 = vmul.f32 %v378, %v378
        %v411 = vmul.f32 %v379, %v379
        %v412 = vmul.f32 %v380, %v380
        %v413 = vmul.f32 %v381, %v381
        %v414 = vmul.f32 %v382, %v382
        %v415 = vmul.f32 %v383, %v383
        %v416 = vmul.f32 %v384, %v384
        %v417 = vmul.f32 %v385, %v385
        %v418 = vmul.f32 %v386, %v386
        %v419 = vmul.f32 %v387, %v387
        %v420 = vmul.f32 %v388, %v388
        %v421 = vmul.f32 %v389, %v389
        %v422 = vmul.f32 %v390, %v390
        %v423 = vmul.f32 %v391, %v391
        %v424 = vmul.f32 %v392, %v392
        %v425 = vmul.f32 %v393, %v393
        %v426 = vmul.f32 %v394, %v394
        %427 = vadd.xlane.f32.xlu0 %v395
        %v428 = vpop.xlane.xlu0 %427
        %429 = vadd.xlane.f32.xlu0 %v396
        %v430 = vpop.xlane.xlu0 %429
        %431 = vadd.xlane.f32.xlu0 %v397
        %v432 = vpop.xlane.xlu0 %431
        %433 = vadd.xlane.f32.xlu0 %v398
        %v434 = vpop.xlane.xlu0 %433
        %435 = vadd.xlane.f32.xlu0 %v399
        %v436 = vpop.xlane.xlu0 %435
        %437 = vadd.xlane.f32.xlu0 %v400
        %v438 = vpop.xlane.xlu0 %437
        %439 = vadd.xlane.f32.xlu0 %v401
        %v440 = vpop.xlane.xlu0 %439
        %441 = vadd.xlane.f32.xlu0 %v402
        %v442 = vpop.xlane.xlu0 %441
        %443 = vadd.xlane.f32.xlu0 %v403
        %v444 = vpop.xlane.xlu0 %443
        %445 = vadd.xlane.f32.xlu0 %v404
        %v446 = vpop.xlane.xlu0 %445
        %447 = vadd.xlane.f32.xlu0 %v405
        %v448 = vpop.xlane.xlu0 %447
        %449 = vadd.xlane.f32.xlu0 %v406
        %v450 = vpop.xlane.xlu0 %449
        %451 = vadd.xlane.f32.xlu0 %v407
        %v452 = vpop.xlane.xlu0 %451
        %453 = vadd.xlane.f32.xlu0 %v408
        %v454 = vpop.xlane.xlu0 %453
        %455 = vadd.xlane.f32.xlu0 %v409
        %v456 = vpop.xlane.xlu0 %455
        %457 = vadd.xlane.f32.xlu0 %v410
        %v458 = vpop.xlane.xlu0 %457
        %459 = vadd.xlane.f32.xlu0 %v411
        %v460 = vpop.xlane.xlu0 %459
        %461 = vadd.xlane.f32.xlu0 %v412
        %v462 = vpop.xlane.xlu0 %461
        %463 = vadd.xlane.f32.xlu0 %v413
        %v464 = vpop.xlane.xlu0 %463
        %465 = vadd.xlane.f32.xlu0 %v414
        %v466 = vpop.xlane.xlu0 %465
        %467 = vadd.xlane.f32.xlu0 %v415
        %v468 = vpop.xlane.xlu0 %467
        %469 = vadd.xlane.f32.xlu0 %v416
        %v470 = vpop.xlane.xlu0 %469
        %471 = vadd.xlane.f32.xlu0 %v417
        %v472 = vpop.xlane.xlu0 %471
        %473 = vadd.xlane.f32.xlu0 %v418
        %v474 = vpop.xlane.xlu0 %473
        %475 = vadd.xlane.f32.xlu0 %v419
        %v476 = vpop.xlane.xlu0 %475
        %477 = vadd.xlane.f32.xlu0 %v420
        %v478 = vpop.xlane.xlu0 %477
        %479 = vadd.xlane.f32.xlu0 %v421
        %v480 = vpop.xlane.xlu0 %479
        %481 = vadd.xlane.f32.xlu0 %v422
        %v482 = vpop.xlane.xlu0 %481
        %483 = vadd.xlane.f32.xlu0 %v423
        %v484 = vpop.xlane.xlu0 %483
        %485 = vadd.xlane.f32.xlu0 %v424
        %v486 = vpop.xlane.xlu0 %485
        %487 = vadd.xlane.f32.xlu0 %v425
        %v488 = vpop.xlane.xlu0 %487
        %489 = vadd.xlane.f32.xlu0 %v426
        %v490 = vpop.xlane.xlu0 %489
        %v491 = vmul.f32 %v428, %v330
        %v492 = vmul.f32 %v430, %v330
        %v493 = vmul.f32 %v432, %v330
        %v494 = vmul.f32 %v434, %v330
        %v495 = vmul.f32 %v436, %v330
        %v496 = vmul.f32 %v438, %v330
        %v497 = vmul.f32 %v440, %v330
        %v498 = vmul.f32 %v442, %v330
        %v499 = vmul.f32 %v444, %v330
        %v500 = vmul.f32 %v446, %v330
        %v501 = vmul.f32 %v448, %v330
        %v502 = vmul.f32 %v450, %v330
        %v503 = vmul.f32 %v452, %v330
        %v504 = vmul.f32 %v454, %v330
        %v505 = vmul.f32 %v456, %v330
        %v506 = vmul.f32 %v458, %v330
        %v507 = vmul.f32 %v460, %v330
        %v508 = vmul.f32 %v462, %v330
        %v509 = vmul.f32 %v464, %v330
        %v510 = vmul.f32 %v466, %v330
        %v511 = vmul.f32 %v468, %v330
        %v512 = vmul.f32 %v470, %v330
        %v513 = vmul.f32 %v472, %v330
        %v514 = vmul.f32 %v474, %v330
        %v515 = vmul.f32 %v476, %v330
        %v516 = vmul.f32 %v478, %v330
        %v517 = vmul.f32 %v480, %v330
        %v518 = vmul.f32 %v482, %v330
        %v519 = vmul.f32 %v484, %v330
        %v520 = vmul.f32 %v486, %v330
        %v521 = vmul.f32 %v488, %v330
        %v522 = vmul.f32 %v490, %v330
        %v523 = vadd.f32 %v491, 1e-05
        %v524 = vadd.f32 %v492, 1e-05
        %v525 = vadd.f32 %v493, 1e-05
        %v526 = vadd.f32 %v494, 1e-05
        %v527 = vadd.f32 %v495, 1e-05
        %v528 = vadd.f32 %v496, 1e-05
        %v529 = vadd.f32 %v497, 1e-05
        %v530 = vadd.f32 %v498, 1e-05
        %v531 = vadd.f32 %v499, 1e-05
        %v532 = vadd.f32 %v500, 1e-05
        %v533 = vadd.f32 %v501, 1e-05
        %v534 = vadd.f32 %v502, 1e-05
        %v535 = vadd.f32 %v503, 1e-05
        %v536 = vadd.f32 %v504, 1e-05
        %v537 = vadd.f32 %v505, 1e-05
        %v538 = vadd.f32 %v506, 1e-05
        %v539 = vadd.f32 %v507, 1e-05
        %v540 = vadd.f32 %v508, 1e-05
        %v541 = vadd.f32 %v509, 1e-05
        %v542 = vadd.f32 %v510, 1e-05
        %v543 = vadd.f32 %v511, 1e-05
        %v544 = vadd.f32 %v512, 1e-05
        %v545 = vadd.f32 %v513, 1e-05
        %v546 = vadd.f32 %v514, 1e-05
        %v547 = vadd.f32 %v515, 1e-05
        %v548 = vadd.f32 %v516, 1e-05
        %v549 = vadd.f32 %v517, 1e-05
        %v550 = vadd.f32 %v518, 1e-05
        %v551 = vadd.f32 %v519, 1e-05
        %v552 = vadd.f32 %v520, 1e-05
        %v553 = vadd.f32 %v521, 1e-05
        %v554 = vadd.f32 %v522, 1e-05
        %v555 = vrsqrt.pop %v523
        %v556 = vrsqrt.pop %v524
        %v557 = vrsqrt.pop %v525
        %v558 = vrsqrt.pop %v526
        %v559 = vrsqrt.pop %v527
        %v560 = vrsqrt.pop %v528
        %v561 = vrsqrt.pop %v529
        %v562 = vrsqrt.pop %v530
        %v563 = vrsqrt.pop %v531
        %v564 = vrsqrt.pop %v532
        %v565 = vrsqrt.pop %v533
        %v566 = vrsqrt.pop %v534
        %v567 = vrsqrt.pop %v535
        %v568 = vrsqrt.pop %v536
        %v569 = vrsqrt.pop %v537
        %v570 = vrsqrt.pop %v538
        %v571 = vrsqrt.pop %v539
        %v572 = vrsqrt.pop %v540
        %v573 = vrsqrt.pop %v541
        %v574 = vrsqrt.pop %v542
        %v575 = vrsqrt.pop %v543
        %v576 = vrsqrt.pop %v544
        %v577 = vrsqrt.pop %v545
        %v578 = vrsqrt.pop %v546
        %v579 = vrsqrt.pop %v547
        %v580 = vrsqrt.pop %v548
        %v581 = vrsqrt.pop %v549
        %v582 = vrsqrt.pop %v550
        %v583 = vrsqrt.pop %v551
        %v584 = vrsqrt.pop %v552
        %v585 = vrsqrt.pop %v553
        %v586 = vrsqrt.pop %v554
        %v587 = vmul.f32 %v363, %v555
        %v588 = vmul.f32 %v364, %v556
        %v589 = vmul.f32 %v365, %v557
        %v590 = vmul.f32 %v366, %v558
        %v591 = vmul.f32 %v367, %v559
        %v592 = vmul.f32 %v368, %v560
        %v593 = vmul.f32 %v369, %v561
        %v594 = vmul.f32 %v370, %v562
        %v595 = vmul.f32 %v371, %v563
        %v596 = vmul.f32 %v372, %v564
        %v597 = vmul.f32 %v373, %v565
        %v598 = vmul.f32 %v374, %v566
        %v599 = vmul.f32 %v375, %v567
        %v600 = vmul.f32 %v376, %v568
        %v601 = vmul.f32 %v377, %v569
        %v602 = vmul.f32 %v378, %v570
        %v603 = vmul.f32 %v379, %v571
        %v604 = vmul.f32 %v380, %v572
        %v605 = vmul.f32 %v381, %v573
        %v606 = vmul.f32 %v382, %v574
        %v607 = vmul.f32 %v383, %v575
        %v608 = vmul.f32 %v384, %v576
        %v609 = vmul.f32 %v385, %v577
        %v610 = vmul.f32 %v386, %v578
        %v611 = vmul.f32 %v387, %v579
        %v612 = vmul.f32 %v388, %v580
        %v613 = vmul.f32 %v389, %v581
        %v614 = vmul.f32 %v390, %v582
        %v615 = vmul.f32 %v391, %v583
        %v616 = vmul.f32 %v392, %v584
        %v617 = vmul.f32 %v393, %v585
        %v618 = vmul.f32 %v394, %v586
        %v619 = vld [vmem:[%s1] sm:$0x1]
        %v621 = vlaneseq
        %v622 = vshrl.u32 %v621, 7
        %v623 = vsub.s32 0, %v622
        %v624 = vrot.slane %v619, %v623
        %v626 = vmul.f32 %v587, %v624
        %v627 = vmul.f32 %v588, %v624
        %v628 = vmul.f32 %v589, %v624
        %v629 = vmul.f32 %v590, %v624
        %v630 = vmul.f32 %v591, %v624
        %v631 = vmul.f32 %v592, %v624
        %v632 = vmul.f32 %v593, %v624
        %v633 = vmul.f32 %v594, %v624
        %v634 = vmul.f32 %v595, %v624
        %v635 = vmul.f32 %v596, %v624
        %v636 = vmul.f32 %v597, %v624
        %v637 = vmul.f32 %v598, %v624
        %v638 = vmul.f32 %v599, %v624
        %v639 = vmul.f32 %v600, %v624
        %v640 = vmul.f32 %v601, %v624
        %v641 = vmul.f32 %v602, %v624
        %v642 = vmul.f32 %v603, %v624
        %v643 = vmul.f32 %v604, %v624
        %v644 = vmul.f32 %v605, %v624
        %v645 = vmul.f32 %v606, %v624
        %v646 = vmul.f32 %v607, %v624
        %v647 = vmul.f32 %v608, %v624
        %v648 = vmul.f32 %v609, %v624
        %v649 = vmul.f32 %v610, %v624
        %v650 = vmul.f32 %v611, %v624
        %v651 = vmul.f32 %v612, %v624
        %v652 = vmul.f32 %v613, %v624
        %v653 = vmul.f32 %v614, %v624
        %v654 = vmul.f32 %v615, %v624
        %v655 = vmul.f32 %v616, %v624
        %v656 = vmul.f32 %v617, %v624
        %v657 = vmul.f32 %v618, %v624
        %v658 = vld [vmem:[%s2] sm:$0x1]
        %v660 = vlaneseq
        %v661 = vshrl.u32 %v660, 7
        %v662 = vsub.s32 0, %v661
        %v663 = vrot.slane %v658, %v662
        %v665 = vadd.f32 %v626, %v663
        %v666 = vadd.f32 %v627, %v663
        %v667 = vadd.f32 %v628, %v663
        %v668 = vadd.f32 %v629, %v663
        %v669 = vadd.f32 %v630, %v663
        %v670 = vadd.f32 %v631, %v663
        %v671 = vadd.f32 %v632, %v663
        %v672 = vadd.f32 %v633, %v663
        %v673 = vadd.f32 %v634, %v663
        %v674 = vadd.f32 %v635, %v663
        %v675 = vadd.f32 %v636, %v663
        %v676 = vadd.f32 %v637, %v663
        %v677 = vadd.f32 %v638, %v663
        %v678 = vadd.f32 %v639, %v663
        %v679 = vadd.f32 %v640, %v663
        %v680 = vadd.f32 %v641, %v663
        %v681 = vadd.f32 %v642, %v663
        %v682 = vadd.f32 %v643, %v663
        %v683 = vadd.f32 %v644, %v663
        %v684 = vadd.f32 %v645, %v663
        %v685 = vadd.f32 %v646, %v663
        %v686 = vadd.f32 %v647, %v663
        %v687 = vadd.f32 %v648, %v663
        %v688 = vadd.f32 %v649, %v663
        %v689 = vadd.f32 %v650, %v663
        %v690 = vadd.f32 %v651, %v663
        %v691 = vadd.f32 %v652, %v663
        %v692 = vadd.f32 %v653, %v663
        %v693 = vadd.f32 %v654, %v663
        %v694 = vadd.f32 %v655, %v663
        %v695 = vadd.f32 %v656, %v663
        %v696 = vadd.f32 %v657, %v663
        %v697 = vpack.c.bf16 %v666, %v665
        %v698 = vpack.c.bf16 %v668, %v667
        %v699 = vpack.c.bf16 %v670, %v669
        %v700 = vpack.c.bf16 %v672, %v671
        %v701 = vpack.c.bf16 %v674, %v673
        %v702 = vpack.c.bf16 %v676, %v675
        %v703 = vpack.c.bf16 %v678, %v677
        %v704 = vpack.c.bf16 %v680, %v679
        %v705 = vpack.c.bf16 %v682, %v681
        %v706 = vpack.c.bf16 %v684, %v683
        %v707 = vpack.c.bf16 %v686, %v685
        %v708 = vpack.c.bf16 %v688, %v687
        %v709 = vpack.c.bf16 %v690, %v689
        %v710 = vpack.c.bf16 %v692, %v691
        %v711 = vpack.c.bf16 %v694, %v693
        %v712 = vpack.c.bf16 %v696, %v695
        %v713 = vld [vmem:[#allocation5] sm:$0xf]
        %v714 = vld [vmem:[#allocation5 + $0x4] sm:$0xf]
        %v715 = vld [vmem:[#allocation5 + $0x8] sm:$0xf]
        %v716 = vld [vmem:[#allocation5 + $0xc] sm:$0xf]
        %v717 = vld [vmem:[#allocation5 + $0x10] sm:$0xf]
        %v718 = vld [vmem:[#allocation5 + $0x14] sm:$0xf]
        %v719 = vld [vmem:[#allocation5 + $0x18] sm:$0xf]
        %v720 = vld [vmem:[#allocation5 + $0x1c] sm:$0xf]
        %v721 = vld [vmem:[#allocation5 + $0x20] sm:$0xf]
        %v722 = vld [vmem:[#allocation5 + $0x24] sm:$0xf]
        %v723 = vld [vmem:[#allocation5 + $0x28] sm:$0xf]
        %v724 = vld [vmem:[#allocation5 + $0x2c] sm:$0xf]
        %v725 = vld [vmem:[#allocation5 + $0x30] sm:$0xf]
        %v726 = vld [vmem:[#allocation5 + $0x34] sm:$0xf]
        %v727 = vld [vmem:[#allocation5 + $0x38] sm:$0xf]
        %v728 = vld [vmem:[#allocation5 + $0x3c] sm:$0xf]
        %v745 = vunpack.c.l.b16 %v713
        %v746 = vunpack.c.l.b16 %v714
        %v747 = vunpack.c.l.b16 %v715
        %v748 = vunpack.c.l.b16 %v716
        %v749 = vunpack.c.l.b16 %v717
        %v750 = vunpack.c.l.b16 %v718
        %v751 = vunpack.c.l.b16 %v719
        %v752 = vunpack.c.l.b16 %v720
        %v753 = vunpack.c.l.b16 %v721
        %v754 = vunpack.c.l.b16 %v722
        %v755 = vunpack.c.l.b16 %v723
        %v756 = vunpack.c.l.b16 %v724
        %v757 = vunpack.c.l.b16 %v725
        %v758 = vunpack.c.l.b16 %v726
        %v759 = vunpack.c.l.b16 %v727
        %v760 = vunpack.c.l.b16 %v728
        %v761 = vpack.c.b16 %v746, %v745
        %v762 = vpack.c.b16 %v748, %v747
        %v763 = vpack.c.b16 %v750, %v749
        %v764 = vpack.c.b16 %v752, %v751
        %v765 = vpack.c.b16 %v754, %v753
        %v766 = vpack.c.b16 %v756, %v755
        %v767 = vpack.c.b16 %v758, %v757
        %v768 = vpack.c.b16 %v760, %v759
        %777 = vmatprep.subr.bf16.mxu0 0
        %778 = vmatpush1.bf16.msra.mxu0 %v761
        %779 = vmatprep.subr.bf16.mxu0 0
        %780 = vmatpush1.bf16.msra.mxu0 %v762
        %781 = vmatprep.subr.bf16.mxu0 0
        %782 = vmatpush1.bf16.msra.mxu0 %v763
        %783 = vmatprep.subr.bf16.mxu0 0
        %784 = vmatpush1.bf16.msra.mxu0 %v764
        %785 = vmatprep.subr.bf16.mxu0 0
        %786 = vmatpush1.bf16.msra.mxu0 %v765
        %787 = vmatprep.subr.bf16.mxu0 0
        %788 = vmatpush1.bf16.msra.mxu0 %v766
        %789 = vmatprep.subr.bf16.mxu0 0
        %790 = vmatpush1.bf16.msra.mxu0 %v767
        %791 = vmatprep.subr.bf16.mxu0 0
        %792 = vmatpush1.bf16.msra.mxu0 %v768
        %793 = vmatprep.subr.bf16.mxu0 0
        %794 = vmatpush1.bf16.msra.mxu0 0
        %795 = vmatprep.subr.bf16.mxu0 0
        %796 = vmatpush1.bf16.msra.mxu0 0
        %797 = vmatprep.subr.bf16.mxu0 0
        %798 = vmatpush1.bf16.msra.mxu0 0
        %799 = vmatprep.subr.bf16.mxu0 0
        %800 = vmatpush1.bf16.msra.mxu0 0
        %801 = vmatprep.subr.bf16.mxu0 0
        %802 = vmatpush1.bf16.msra.mxu0 0
        %803 = vmatprep.subr.bf16.mxu0 0
        %804 = vmatpush1.bf16.msra.mxu0 0
        %805 = vmatprep.subr.bf16.mxu0 0
        %806 = vmatpush1.bf16.msra.mxu0 0
        %807 = vmatprep.subr.bf16.mxu0 0
        %808 = vmatpush1.bf16.msra.mxu0 0
        %809 = vmatprep.mubr.bf16.mxu0 0
        %810 = vmatmul.mubr.bf16.gmra.mrb[0].mxu0 %v697
        %v811 = vpop.f32.mrb[0].mxu0
        %v812 = vadd.f32 0.0, %v811
        %v813 = vpop.f32.mrb[0].mxu0
        %v814 = vpop.f32.mrb[0].mxu0
        %v815 = vadd.f32 0.0, %v814
        %v816 = vpop.f32.mrb[0].mxu0
        %817 = vmatprep.mubr.bf16.mxu0 0
        %818 = vmatmul.mubr.bf16.gmra.mrb[0].mxu0 %v698
        %v819 = vpop.f32.mrb[0].mxu0
        %v820 = vadd.f32 0.0, %v819
        %v821 = vpop.f32.mrb[0].mxu0
        %v822 = vpop.f32.mrb[0].mxu0
        %v823 = vadd.f32 0.0, %v822
        %v824 = vpop.f32.mrb[0].mxu0
        %825 = vmatprep.mubr.bf16.mxu0 0
        %826 = vmatmul.mubr.bf16.gmra.mrb[0].mxu0 %v699
        %v827 = vpop.f32.mrb[0].mxu0
        %v828 = vadd.f32 0.0, %v827
        %v829 = vpop.f32.mrb[0].mxu0
        %v830 = vpop.f32.mrb[0].mxu0
        %v831 = vadd.f32 0.0, %v830
        %v832 = vpop.f32.mrb[0].mxu0
        %833 = vmatprep.mubr.bf16.mxu0 0
        %834 = vmatmul.mubr.bf16.gmra.mrb[0].mxu0 %v700
        %v835 = vpop.f32.mrb[0].mxu0
        %v836 = vadd.f32 0.0, %v835
        %v837 = vpop.f32.mrb[0].mxu0
        %v838 = vpop.f32.mrb[0].mxu0
        %v839 = vadd.f32 0.0, %v838
        %v840 = vpop.f32.mrb[0].mxu0
        %841 = vmatprep.mubr.bf16.mxu0 0
        %842 = vmatmul.mubr.bf16.gmra.mrb[0].mxu0 %v701
        %v843 = vpop.f32.mrb[0].mxu0
        %v844 = vadd.f32 0.0, %v843
        %v845 = vpop.f32.mrb[0].mxu0
        %v846 = vpop.f32.mrb[0].mxu0
        %v847 = vadd.f32 0.0, %v846
        %v848 = vpop.f32.mrb[0].mxu0
        %849 = vmatprep.mubr.bf16.mxu0 0
        %850 = vmatmul.mubr.bf16.gmra.mrb[0].mxu0 %v702
        %v851 = vpop.f32.mrb[0].mxu0
        %v852 = vadd.f32 0.0, %v851
        %v853 = vpop.f32.mrb[0].mxu0
        %v854 = vpop.f32.mrb[0].mxu0
        %v855 = vadd.f32 0.0, %v854
        %v856 = vpop.f32.mrb[0].mxu0
        %857 = vmatprep.mubr.bf16.mxu0 0
        %858 = vmatmul.mubr.bf16.gmra.mrb[0].mxu0 %v703
        %v859 = vpop.f32.mrb[0].mxu0
        %v860 = vadd.f32 0.0, %v859
        %v861 = vpop.f32.mrb[0].mxu0
        %v862 = vpop.f32.mrb[0].mxu0
        %v863 = vadd.f32 0.0, %v862
        %v864 = vpop.f32.mrb[0].mxu0
        %865 = vmatprep.mubr.bf16.mxu0 0
        %866 = vmatmul.mubr.bf16.gmra.mrb[0].mxu0 %v704
        %v867 = vpop.f32.mrb[0].mxu0
        %v868 = vadd.f32 0.0, %v867
        %v869 = vpop.f32.mrb[0].mxu0
        %v870 = vpop.f32.mrb[0].mxu0
        %v871 = vadd.f32 0.0, %v870
        %v872 = vpop.f32.mrb[0].mxu0
        %873 = vmatprep.mubr.bf16.mxu0 0
        %874 = vmatmul.mubr.bf16.gmra.mrb[0].mxu0 %v705
        %v875 = vpop.f32.mrb[0].mxu0
        %v876 = vadd.f32 0.0, %v875
        %v877 = vpop.f32.mrb[0].mxu0
        %v878 = vpop.f32.mrb[0].mxu0
        %v879 = vadd.f32 0.0, %v878
        %v880 = vpop.f32.mrb[0].mxu0
        %881 = vmatprep.mubr.bf16.mxu0 0
        %882 = vmatmul.mubr.bf16.gmra.mrb[0].mxu0 %v706
        %v883 = vpop.f32.mrb[0].mxu0
        %v884 = vadd.f32 0.0, %v883
        %v885 = vpop.f32.mrb[0].mxu0
        %v886 = vpop.f32.mrb[0].mxu0
        %v887 = vadd.f32 0.0, %v886
        %v888 = vpop.f32.mrb[0].mxu0
        %889 = vmatprep.mubr.bf16.mxu0 0
        %890 = vmatmul.mubr.bf16.gmra.mrb[0].mxu0 %v707
        %v891 = vpop.f32.mrb[0].mxu0
        %v892 = vadd.f32 0.0, %v891
        %v893 = vpop.f32.mrb[0].mxu0
        %v894 = vpop.f32.mrb[0].mxu0
        %v895 = vadd.f32 0.0, %v894
        %v896 = vpop.f32.mrb[0].mxu0
        %897 = vmatprep.mubr.bf16.mxu0 0
        %898 = vmatmul.mubr.bf16.gmra.mrb[0].mxu0 %v708
        %v899 = vpop.f32.mrb[0].mxu0
        %v900 = vadd.f32 0.0, %v899
        %v901 = vpop.f32.mrb[0].mxu0
        %v902 = vpop.f32.mrb[0].mxu0
        %v903 = vadd.f32 0.0, %v902
        %v904 = vpop.f32.mrb[0].mxu0
        %905 = vmatprep.mubr.bf16.mxu0 0
        %906 = vmatmul.mubr.bf16.gmra.mrb[0].mxu0 %v709
        %v907 = vpop.f32.mrb[0].mxu0
        %v908 = vadd.f32 0.0, %v907
        %v909 = vpop.f32.mrb[0].mxu0
        %v910 = vpop.f32.mrb[0].mxu0
        %v911 = vadd.f32 0.0, %v910
        %v912 = vpop.f32.mrb[0].mxu0
        %913 = vmatprep.mubr.bf16.mxu0 0
        %914 = vmatmul.mubr.bf16.gmra.mrb[0].mxu0 %v710
        %v915 = vpop.f32.mrb[0].mxu0
        %v916 = vadd.f32 0.0, %v915
        %v917 = vpop.f32.mrb[0].mxu0
        %v918 = vpop.f32.mrb[0].mxu0
        %v919 = vadd.f32 0.0, %v918
        %v920 = vpop.f32.mrb[0].mxu0
        %921 = vmatprep.mubr.bf16.mxu0 0
        %922 = vmatmul.mubr.bf16.gmra.mrb[0].mxu0 %v711
        %v923 = vpop.f32.mrb[0].mxu0
        %v924 = vadd.f32 0.0, %v923
        %v925 = vpop.f32.mrb[0].mxu0
        %v926 = vpop.f32.mrb[0].mxu0
        %v927 = vadd.f32 0.0, %v926
        %v928 = vpop.f32.mrb[0].mxu0
        %929 = vmatprep.mubr.bf16.mxu0 0
        %930 = vmatmul.mubr.bf16.gmra.mrb[0].mxu0 %v712
        %v931 = vpop.f32.mrb[0].mxu0
        %v932 = vadd.f32 0.0, %v931
        %v933 = vpop.f32.mrb[0].mxu0
        %v934 = vpop.f32.mrb[0].mxu0
        %v935 = vadd.f32 0.0, %v934
        %v936 = vpop.f32.mrb[0].mxu0
        %937 = vdwg.mxu0
        %938 = vst [vmem:[%s230] sm:$0xff] %v812
        %939 = vst [vmem:[%s230 + $0x8] sm:$0xff] %v815
        %940 = vst [vmem:[%s230 + $0x10] sm:$0xff] %v820
        %941 = vst [vmem:[%s230 + $0x18] sm:$0xff] %v823
        %942 = vst [vmem:[%s230 + $0x20] sm:$0xff] %v828
        %943 = vst [vmem:[%s230 + $0x28] sm:$0xff] %v831
        %944 = vst [vmem:[%s230 + $0x30] sm:$0xff] %v836
        %945 = vst [vmem:[%s230 + $0x38] sm:$0xff] %v839
        %946 = vst [vmem:[%s230 + $0x40] sm:$0xff] %v844
        %947 = vst [vmem:[%s230 + $0x48] sm:$0xff] %v847
        %948 = vst [vmem:[%s230 + $0x50] sm:$0xff] %v852
        %949 = vst [vmem:[%s230 + $0x58] sm:$0xff] %v855
        %950 = vst [vmem:[%s230 + $0x60] sm:$0xff] %v860
        %951 = vst [vmem:[%s230 + $0x68] sm:$0xff] %v863
        %952 = vst [vmem:[%s230 + $0x70] sm:$0xff] %v868
        %953 = vst [vmem:[%s230 + $0x78] sm:$0xff] %v871
        %954 = vst [vmem:[%s230 + $0x80] sm:$0xff] %v876
        %955 = vst [vmem:[%s230 + $0x88] sm:$0xff] %v879
        %956 = vst [vmem:[%s230 + $0x90] sm:$0xff] %v884
        %957 = vst [vmem:[%s230 + $0x98] sm:$0xff] %v887
        %958 = vst [vmem:[%s230 + $0xa0] sm:$0xff] %v892
        %959 = vst [vmem:[%s230 + $0xa8] sm:$0xff] %v895
        %960 = vst [vmem:[%s230 + $0xb0] sm:$0xff] %v900
        %961 = vst [vmem:[%s230 + $0xb8] sm:$0xff] %v903
        %962 = vst [vmem:[%s230 + $0xc0] sm:$0xff] %v908
        %963 = vst [vmem:[%s230 + $0xc8] sm:$0xff] %v911
        %964 = vst [vmem:[%s230 + $0xd0] sm:$0xff] %v916
        %965 = vst [vmem:[%s230 + $0xd8] sm:$0xff] %v919
        %966 = vst [vmem:[%s230 + $0xe0] sm:$0xff] %v924
        %967 = vst [vmem:[%s230 + $0xe8] sm:$0xff] %v927
        %968 = vst [vmem:[%s230 + $0xf0] sm:$0xff] %v932
        %969 = vst [vmem:[%s230 + $0xf8] sm:$0xff] %v935
        %s970 = sand.u32 %s119, 1
        %s971 = scalar_lea.sflag [#allocation4], %s970
        %s972 = sand.u32 %s119, 1
        %s973 = smul.addr %s972, 256
        %s974 = scalar_lea.vmem [#allocation7], %s973
        // Predicated region
        $region45: #{tpu_custom_call.1} parent=35 // pred_check
          %p975 = pneg %p129
        $region46: #{tpu_custom_call.1} parent=35 // pred_check_branch
          %977 = sbr.rel (%p975) target = $region48
        $region47: #{tpu_custom_call.1} parent=35 // pred_region
          %s978 = smul.u32 32, %s22
          %s980 = ssub.s32 4096, 4096
          %981 = vsyncadd %s971, %s980
          %s982 = smul.addr %s978, 128
          %s983 = scalar_lea.hbm %s4, %s982
          %s984 = sshll.u32 %s974, 4
          %s985 = int_to_ptr.vmem [resolvable:$true] %s984
          %990 = dma.vmem_to_hbm [thread:$0]  %s985, 4096, %s983, %s971, 128, 128, 8
        $region48: #{tpu_custom_call.1} parent=35 // pred_fallthru
          _
      $region36: #{tpu_custom_call.1} parent=5 // pred_fallthru
        _
      %p991 = scmp.le.s32.totalorder 2, %s17
      // Predicated region
      $region49: #{tpu_custom_call.1} parent=5 // pred_check
        %p992 = pneg %p991
      $region50: #{tpu_custom_call.1} parent=5 // pred_check_branch
        %994 = sbr.rel (%p992) target = $region52
      $region51: #{tpu_custom_call.1} parent=5 // pred_region
        %s995 = ssub.s32 %s17, 2
        // Predicated region
        $region53: #{tpu_custom_call.1} parent=51 // pred_check
          %p996 = pneg %p135
        $region54: #{tpu_custom_call.1} parent=51 // pred_check_branch
          %998 = sbr.rel (%p996) target = $region56
        $region55: #{tpu_custom_call.1} parent=51 // pred_region
          %s999 = sand.u32 %s120, 1
          %s1000 = scalar_lea.sflag [#allocation4], %s999
          %s1001 = sand.u32 %s120, 1
          %s1002 = smul.addr %s1001, 256
          %s1003 = scalar_lea.vmem [#allocation7], %s1002
          %1004 = dma.done %s1000, 4096
        $region56: #{tpu_custom_call.1} parent=51 // pred_fallthru
          _
      $region52: #{tpu_custom_call.1} parent=5 // pred_fallthru
        _
    $region6: #{tpu_custom_call.1} parent=1 // loop_footer
      %s21 = sadd.s32 1, %s17
    $region7: #{tpu_custom_call.1} parent=1 // loop_footer_branch
      %16 = sbr.rel target = $region3
    $region8: #{tpu_custom_call.1} parent=1 // loop_exit
      _
    %1005 = vsyncpa [#allocation3], 1
    %s1006 = scalar_lea.sflag [#allocation3], 1
    %1007 = vsyncpa %s1006, 1
    %1008 = vsyncpa [#allocation6], 1
    %1009 = vsyncpa [#allocation4], 1
    %s1010 = scalar_lea.sflag [#allocation4], 1
    %1011 = vsyncpa %s1010, 1

</llo_original>
